<compile_context>
chip_gen: v5e
topology: v5e:2x2
jax: 0.10.0
libtpu: 0.0.40
codegen_flags: <defaults>
</compile_context>

<pallas_src>
import functools
import math

import jax
import jax.numpy as jnp
from jax import lax
from jax.experimental import pallas as pl
from jax.experimental.pallas import tpu as pltpu


def add_norm_kernel(x_ref, r_ref, g_ref, b_ref, o_ref, *, eps):
    # x_ref, r_ref: (TM, D) tiles of x1 and residual
    # g_ref, b_ref: (1, D) LayerNorm weight / bias (resident, broadcast)
    # o_ref:        (TM, D) output tile
    x = x_ref[...].astype(jnp.float32)
    r = r_ref[...].astype(jnp.float32)

    # dropout (eval mode) -> identity, then residual add
    y = x + r

    # LayerNorm over the feature axis (biased variance, matches torch).
    mean = jnp.mean(y, axis=-1, keepdims=True)
    centered = y - mean
    var = jnp.mean(centered * centered, axis=-1, keepdims=True)
    inv = lax.rsqrt(var + eps)

    gamma = g_ref[...].astype(jnp.float32)
    beta = b_ref[...].astype(jnp.float32)
    out = centered * inv * gamma + beta

    o_ref[...] = out.astype(o_ref.dtype)


def _pick_tile_m(M, D, itemsize, tile_m_cap, vmem_budget=24 * 1024 * 1024):
    """Largest row tile (multiple of 8) that fits the VMEM budget and <= cap."""
    # Per-row footprint: x, r, out double-buffered (6x input dtype) plus ~2
    # f32 temporaries for the normalization math.
    bytes_per_row = max(1, D * (6 * itemsize + 8))
    tm = min(tile_m_cap, vmem_budget // bytes_per_row)
    tm = max(8, (tm // 8) * 8)
    # Never larger than M rounded up to the f32 sublane quantum.
    return min(tm, ((M + 7) // 8) * 8)


def add_and_norm(x1, residual, gamma, beta, *, eps=1e-5, tile_m=1024):
    """x1, residual: (..., D). gamma, beta: (D,). Returns same shape as x1."""
    assert x1.shape == residual.shape
    orig_shape = x1.shape
    D = orig_shape[-1]
    M = math.prod(orig_shape[:-1]) if len(orig_shape) > 1 else 1

    x2 = x1.reshape(M, D)
    r2 = residual.reshape(M, D)
    g2 = gamma.reshape(1, D)
    b2 = beta.reshape(1, D)

    tm = _pick_tile_m(M, D, jnp.dtype(x1.dtype).itemsize, tile_m)
    n_tiles = pl.cdiv(M, tm)  # partial edge block is masked by Pallas

    out2d = pl.pallas_call(
        functools.partial(add_norm_kernel, eps=eps),
        out_shape=jax.ShapeDtypeStruct((M, D), x1.dtype),
        grid_spec=pltpu.PrefetchScalarGridSpec(
            num_scalar_prefetch=0,
            grid=(n_tiles,),
            in_specs=[
                pl.BlockSpec((tm, D), lambda i: (i, 0)),   # x1 tile
                pl.BlockSpec((tm, D), lambda i: (i, 0)),   # residual tile
                pl.BlockSpec((1, D), lambda i: (0, 0)),    # gamma (resident)
                pl.BlockSpec((1, D), lambda i: (0, 0)),    # beta  (resident)
            ],
            out_specs=pl.BlockSpec((tm, D), lambda i: (i, 0)),
        ),
        compiler_params=pltpu.CompilerParams(
            dimension_semantics=("parallel",),
            vmem_limit_bytes=64 * 1024 * 1024,
        ),
    )(x2, r2, g2, b2)

    return out2d.reshape(orig_shape)


def reference_add_and_norm(x1, residual, gamma, beta, eps=1e-5):
    y = x1 + residual
    mean = jnp.mean(y, axis=-1, keepdims=True)
    var = jnp.mean((y - mean) ** 2, axis=-1, keepdims=True)
    return (y - mean) * lax.rsqrt(var + eps) * gamma + beta


if __name__ == "__main__":
    key = jax.random.PRNGKey(0)

    # Case 1: lane-dense feature dim (input_dim=128), batch=2, seq=8.
    B, S, D = 2, 8, 128
    k1, k2, k3, k4, key = jax.random.split(key, 5)
    x1 = jax.random.normal(k1, (B, S, D), dtype=jnp.float32)
    res = jax.random.normal(k2, (B, S, D), dtype=jnp.float32)
    gamma = 1.0 + 0.1 * jax.random.normal(k3, (D,), dtype=jnp.float32)
    beta = 0.1 * jax.random.normal(k4, (D,), dtype=jnp.float32)

    out = jax.block_until_ready(add_and_norm(x1, res, gamma, beta))
    ref = reference_add_and_norm(x1, res, gamma, beta)
    assert out.shape == (B, S, D)
    assert jnp.allclose(out, ref, atol=1e-5, rtol=1e-5), "mismatch vs reference (case 1)"

    # Case 2: ragged row count + non-128 feature dim (exercises the masked
    # partial-edge-block path: M=15 rows with a 16-row tile).
    B2, S2, D2 = 3, 5, 64
    k1, k2, k3, k4, key = jax.random.split(key, 5)
    x1b = jax.random.normal(k1, (B2, S2, D2), dtype=jnp.float32)
    resb = jax.random.normal(k2, (B2, S2, D2), dtype=jnp.float32)
    gammab = 1.0 + 0.1 * jax.random.normal(k3, (D2,), dtype=jnp.float32)
    betab = 0.1 * jax.random.normal(k4, (D2,), dtype=jnp.float32)

    outb = jax.block_until_ready(add_and_norm(x1b, resb, gammab, betab))
    refb = reference_add_and_norm(x1b, resb, gammab, betab)
    assert outb.shape == (B2, S2, D2)
    assert jnp.allclose(outb, refb, atol=1e-5, rtol=1e-5), "mismatch vs reference (case 2)"

    # Case 3: force a small tile (multi-step grid) to exercise pipelining /
    # megacore sharding across grid steps.
    outc = jax.block_until_ready(add_and_norm(x1, res, gamma, beta, tile_m=8))
    assert jnp.allclose(outc, ref, atol=1e-5, rtol=1e-5), "mismatch vs reference (case 3)"

    print("KERNEL_OK")
</pallas_src>

<mosaic_0001>
module attributes {stable_mosaic.version = 11 : i64} {
  func.func @add_norm_kernel(%arg0: i32, %arg1: memref<16x128xf32, #tpu.memory_space<vmem>>, %arg2: memref<16x128xf32, #tpu.memory_space<vmem>>, %arg3: memref<1x128xf32, #tpu.memory_space<vmem>>, %arg4: memref<1x128xf32, #tpu.memory_space<vmem>>, %arg5: memref<16x128xf32, #tpu.memory_space<vmem>>) attributes {dimension_semantics = [#tpu.dimension_semantics<parallel>], iteration_bounds = array<i64: 1>, scalar_prefetch = 0 : i64, scratch_operands = 0 : i64, tpu.core_type = #tpu.core_type<tc>, window_params = [{transform_indices = @transform_0, window_bounds = array<i64: 16, 128>}, {transform_indices = @transform_1, window_bounds = array<i64: 16, 128>}, {pipeline_mode = #tpu.pipeline_mode<synchronous>, transform_indices = @transform_2, window_bounds = array<i64: 1, 128>}, {pipeline_mode = #tpu.pipeline_mode<synchronous>, transform_indices = @transform_3, window_bounds = array<i64: 1, 128>}, {transform_indices = @transform_4, window_bounds = array<i64: 16, 128>}]} {
    %c0 = arith.constant 0 : index
    %c0_0 = arith.constant 0 : index
    %0 = vector.load %arg1[%c0, %c0_0] : memref<16x128xf32, #tpu.memory_space<vmem>>, vector<16x128xf32>
    %c0_1 = arith.constant 0 : index
    %c0_2 = arith.constant 0 : index
    %1 = vector.load %arg2[%c0_1, %c0_2] : memref<16x128xf32, #tpu.memory_space<vmem>>, vector<16x128xf32>
    %2 = arith.addf %0, %1 : vector<16x128xf32>
    %cst = arith.constant dense<0.000000e+00> : vector<16xf32>
    %3 = vector.multi_reduction <add>, %2, %cst [1] : vector<16x128xf32> to vector<16xf32>
    %4 = vector.shape_cast %3 : vector<16xf32> to vector<16x1xf32>
    %cst_3 = arith.constant 1.280000e+02 : f32
    %5 = vector.broadcast %cst_3 : f32 to vector<16x1xf32>
    %6 = arith.divf %4, %5 : vector<16x1xf32>
    %7 = vector.broadcast %6 : vector<16x1xf32> to vector<16x128xf32>
    %8 = arith.subf %2, %7 : vector<16x128xf32>
    %9 = arith.mulf %8, %8 : vector<16x128xf32>
    %cst_4 = arith.constant dense<0.000000e+00> : vector<16xf32>
    %10 = vector.multi_reduction <add>, %9, %cst_4 [1] : vector<16x128xf32> to vector<16xf32>
    %11 = vector.shape_cast %10 : vector<16xf32> to vector<16x1xf32>
    %cst_5 = arith.constant 1.280000e+02 : f32
    %12 = vector.broadcast %cst_5 : f32 to vector<16x1xf32>
    %13 = arith.divf %11, %12 : vector<16x1xf32>
    %cst_6 = arith.constant 9.99999974E-6 : f32
    %14 = vector.broadcast %cst_6 : f32 to vector<16x1xf32>
    %15 = arith.addf %13, %14 : vector<16x1xf32>
    %16 = math.rsqrt %15 : vector<16x1xf32>
    %c0_7 = arith.constant 0 : index
    %c0_8 = arith.constant 0 : index
    %17 = vector.load %arg3[%c0_7, %c0_8] : memref<1x128xf32, #tpu.memory_space<vmem>>, vector<1x128xf32>
    %c0_9 = arith.constant 0 : index
    %c0_10 = arith.constant 0 : index
    %18 = vector.load %arg4[%c0_9, %c0_10] : memref<1x128xf32, #tpu.memory_space<vmem>>, vector<1x128xf32>
    %19 = vector.broadcast %16 : vector<16x1xf32> to vector<16x128xf32>
    %20 = arith.mulf %8, %19 : vector<16x128xf32>
    %21 = vector.broadcast %17 : vector<1x128xf32> to vector<16x128xf32>
    %22 = arith.mulf %20, %21 : vector<16x128xf32>
    %23 = vector.broadcast %18 : vector<1x128xf32> to vector<16x128xf32>
    %24 = arith.addf %22, %23 : vector<16x128xf32>
    %c0_11 = arith.constant 0 : index
    %c0_12 = arith.constant 0 : index
    %25 = vector.load %arg5[%c0_11, %c0_12] : memref<16x128xf32, #tpu.memory_space<vmem>>, vector<16x128xf32>
    tpu.vector_store %arg5[%c0_11, %c0_12], %24 {strides = array<i32>} : memref<16x128xf32, #tpu.memory_space<vmem>>, vector<16x128xf32>,
    return
  }
  func.func @transform_0(%arg0: i32) -> (i32, i32) {
    %c0_i32 = arith.constant 0 : i32
    %c0_i32_0 = arith.constant 0 : i32
    return %arg0, %c0_i32 : i32, i32
  }
  func.func @transform_1(%arg0: i32) -> (i32, i32) {
    %c0_i32 = arith.constant 0 : i32
    %c0_i32_0 = arith.constant 0 : i32
    return %arg0, %c0_i32 : i32, i32
  }
  func.func @transform_2(%arg0: i32) -> (i32, i32) {
    %c0_i32 = arith.constant 0 : i32
    %c0_i32_0 = arith.constant 0 : i32
    %c0_i32_1 = arith.constant 0 : i32
    return %c0_i32, %c0_i32_0 : i32, i32
  }
  func.func @transform_3(%arg0: i32) -> (i32, i32) {
    %c0_i32 = arith.constant 0 : i32
    %c0_i32_0 = arith.constant 0 : i32
    %c0_i32_1 = arith.constant 0 : i32
    return %c0_i32, %c0_i32_0 : i32, i32
  }
  func.func @transform_4(%arg0: i32) -> (i32, i32) {
    %c0_i32 = arith.constant 0 : i32
    %c0_i32_0 = arith.constant 0 : i32
    return %arg0, %c0_i32 : i32, i32
  }
}

</mosaic_0001>

<llo_original>
// kernel: tpu_custom_call.1
$region0: #{tpu_custom_call.1}
  #allocation0 [shape = 'u32[]', space=smem, size = 0x4, offset = 0x4, fixed_abs, tag = 'smem constant byte address 0x4 - core index']
  #allocation1 [shape = 'u32[72,128]{1,0:T(1,128)}', space=vmem, size = 0x9000, scoped, tag = 'internal scratch']
  %s0 = inlined_call_operand.hbm [shape: f32[16,128], index: 0, kind: input, shape index: {}]
  %s1 = inlined_call_operand.hbm [shape: f32[16,128], index: 1, kind: input, shape index: {}]
  %s2 = inlined_call_operand.vmem [shape: f32[1,128], index: 2, kind: input, shape index: {}]
  %s3 = inlined_call_operand.vmem [shape: f32[1,128], index: 3, kind: input, shape index: {}]
  %s4 = inlined_call_operand.hbm [shape: f32[16,128], index: 4, kind: output, shape index: {}]
  %s5 = sld [smem:[#allocation0]]
  $region34: #{tpu_custom_call.1} parent=0
    _
  %s7 = ssub.s32 1, %s5
  %s8 = scalar_select 0, %s7, %s5
  $region1: #{tpu_custom_call.1} parent=0
    #allocation2 [shape = 'u8[8192]{0}', space=vmem, size = 0x2000, scoped, tag = 'input window, operand 0, single buffered']
    #allocation3 [shape = 's32[1]{0}', space=sflag, size = 0x4, scoped, tag = 'scoped memory for tpu_custom_call.1']
    #allocation4 [shape = 's32[1]{0}', space=sflag, size = 0x4, scoped, tag = 'scoped memory for tpu_custom_call.1']
    #allocation5 [shape = 'u8[8192]{0}', space=vmem, size = 0x2000, scoped, tag = 'input window, operand 1, single buffered']
    #allocation6 [shape = 's32[1]{0}', space=sflag, size = 0x4, scoped, tag = 'scoped memory for tpu_custom_call.1']
    #allocation7 [shape = 'u8[8192]{0}', space=vmem, size = 0x2000, scoped, tag = 'output window, operand 0, single buffered']
    %9 = vsyncpa [#allocation3], 0
    %10 = vsyncpa [#allocation6], 0
    %11 = vsyncpa [#allocation4], 0
    // Predicated region
    $region2: #{tpu_custom_call.1} parent=1 // pred_check
      _
    $region3: #{tpu_custom_call.1} parent=1 // pred_check_branch
      %13 = sbr.rel (0) target = $region5
    $region4: #{tpu_custom_call.1} parent=1 // pred_region
      %15 = vsyncadd [#allocation3], 0
      %s16 = sshll.u32 %s0, 4
      %s17 = int_to_ptr.hbm [resolvable:$true] %s16
      %s18 = sshll.u32 [#allocation2], 4
      %s19 = int_to_ptr.vmem [resolvable:$true] %s18
      %24 = dma.hbm_to_vmem [thread:$0]  %s17, 256, %s19, [#allocation3], 128, 128, 8
    $region5: #{tpu_custom_call.1} parent=1 // pred_fallthru
      _
    // Predicated region
    $region6: #{tpu_custom_call.1} parent=1 // pred_check
      _
    $region7: #{tpu_custom_call.1} parent=1 // pred_check_branch
      %26 = sbr.rel (0) target = $region9
    $region8: #{tpu_custom_call.1} parent=1 // pred_region
      %28 = vsyncadd [#allocation6], 0
      %s29 = sshll.u32 %s1, 4
      %s30 = int_to_ptr.hbm [resolvable:$true] %s29
      %s31 = sshll.u32 [#allocation5], 4
      %s32 = int_to_ptr.vmem [resolvable:$true] %s31
      %37 = dma.hbm_to_vmem [thread:$0]  %s30, 256, %s32, [#allocation6], 128, 128, 8
    $region9: #{tpu_custom_call.1} parent=1 // pred_fallthru
      _
    // Predicated region
    $region10: #{tpu_custom_call.1} parent=1 // pred_check
      _
    $region11: #{tpu_custom_call.1} parent=1 // pred_check_branch
      %39 = sbr.rel (0) target = $region13
    $region12: #{tpu_custom_call.1} parent=1 // pred_region
      _
    $region13: #{tpu_custom_call.1} parent=1 // pred_fallthru
      _
    // Predicated region
    $region14: #{tpu_custom_call.1} parent=1 // pred_check
      _
    $region15: #{tpu_custom_call.1} parent=1 // pred_check_branch
      %41 = sbr.rel (0) target = $region17
    $region16: #{tpu_custom_call.1} parent=1 // pred_region
      _
    $region17: #{tpu_custom_call.1} parent=1 // pred_fallthru
      _
    // Predicated region
    $region18: #{tpu_custom_call.1} parent=1 // pred_check
      _
    $region19: #{tpu_custom_call.1} parent=1 // pred_check_branch
      %43 = sbr.rel (0) target = $region21
    $region20: #{tpu_custom_call.1} parent=1 // pred_region
      %45 = dma.done [#allocation3], 256
    $region21: #{tpu_custom_call.1} parent=1 // pred_fallthru
      _
    // Predicated region
    $region22: #{tpu_custom_call.1} parent=1 // pred_check
      _
    $region23: #{tpu_custom_call.1} parent=1 // pred_check_branch
      %47 = sbr.rel (0) target = $region25
    $region24: #{tpu_custom_call.1} parent=1 // pred_region
      %49 = dma.done [#allocation6], 256
    $region25: #{tpu_custom_call.1} parent=1 // pred_fallthru
      _
    %v50 = vld [vmem:[#allocation2] sm:$0xff]
    %v51 = vld [vmem:[#allocation2 + $0x8] sm:$0xff]
    %v52 = vld [vmem:[#allocation5] sm:$0xff]
    %v53 = vld [vmem:[#allocation5 + $0x8] sm:$0xff]
    %v54 = vadd.f32 %v50, %v52
    %v55 = vadd.f32 %v51, %v53
    %56 = vadd.xlane.f32.xlu0 %v54
    %v57 = vpop.xlane.xlu0 %56
    %58 = vadd.xlane.f32.xlu0 %v55
    %v59 = vpop.xlane.xlu0 %58
    %v60 = vrcp.pop 128.0
    %v61 = vmul.f32 128.0, %v60
    %v62 = vsub.f32 1.0, %v61
    %v63 = vmul.f32 %v60, %v62
    %v64 = vadd.f32 %v60, %v63
    %vm65 = vweird.f32 %v60
    %v66 = vsel %vm65, %v60, %v64
    %v67 = vmul.f32 %v57, %v66
    %v68 = vmul.f32 %v59, %v66
    %v69 = vsub.f32 %v54, %v67
    %v70 = vsub.f32 %v55, %v68
    %v71 = vmul.f32 %v69, %v69
    %v72 = vmul.f32 %v70, %v70
    %73 = vadd.xlane.f32.xlu0 %v71
    %v74 = vpop.xlane.xlu0 %73
    %75 = vadd.xlane.f32.xlu0 %v72
    %v76 = vpop.xlane.xlu0 %75
    %v77 = vmul.f32 %v74, %v66
    %v78 = vmul.f32 %v76, %v66
    %v79 = vadd.f32 %v77, 1e-05
    %v80 = vadd.f32 %v78, 1e-05
    %v81 = vrsqrt.pop %v79
    %v82 = vmul.f32 %v81, %v79
    %v83 = vmul.f32 %v82, %v81
    %v84 = vmul.f32 0.5, %v83
    %v85 = vsub.f32 1.5, %v84
    %v86 = vmul.f32 %v81, %v85
    %vm87 = vweird.f32 %v79
    %vm88 = vweird.f32 %v81
    %vm89 = vmor %vm87, %vm88
    %v90 = vsel %vm89, %v81, %v86
    %v91 = vrsqrt.pop %v80
    %v92 = vmul.f32 %v91, %v80
    %v93 = vmul.f32 %v92, %v91
    %v94 = vmul.f32 0.5, %v93
    %v95 = vsub.f32 1.5, %v94
    %v96 = vmul.f32 %v91, %v95
    %vm97 = vweird.f32 %v80
    %vm98 = vweird.f32 %v91
    %vm99 = vmor %vm97, %vm98
    %v100 = vsel %vm99, %v91, %v96
    %v101 = vld [vmem:[%s2] sm:$0x1]
    %v102 = vld [vmem:[%s3] sm:$0x1]
    %v103 = vmul.f32 %v69, %v90
    %v104 = vmul.f32 %v70, %v100
    %v106 = vperm.slane %v101, 0
    %v108 = vmul.f32 %v103, %v106
    %v109 = vmul.f32 %v104, %v106
    %v111 = vperm.slane %v102, 0
    %v113 = vadd.f32 %v108, %v111
    %v114 = vadd.f32 %v109, %v111
    %115 = vst [vmem:[#allocation7] sm:$0xff] %v113
    %116 = vst [vmem:[#allocation7 + $0x8] sm:$0xff] %v114
    // Predicated region
    $region26: #{tpu_custom_call.1} parent=1 // pred_check
      _
    $region27: #{tpu_custom_call.1} parent=1 // pred_check_branch
      %118 = sbr.rel (0) target = $region29
    $region28: #{tpu_custom_call.1} parent=1 // pred_region
      %120 = vsyncadd [#allocation4], 0
      %s121 = sshll.u32 [#allocation7], 4
      %s122 = int_to_ptr.vmem [resolvable:$true] %s121
      %s123 = sshll.u32 %s4, 4
      %s124 = int_to_ptr.hbm [resolvable:$true] %s123
      %129 = dma.vmem_to_hbm [thread:$0]  %s122, 256, %s124, [#allocation4], 128, 128, 8
    $region29: #{tpu_custom_call.1} parent=1 // pred_fallthru
      _
    // Predicated region
    $region30: #{tpu_custom_call.1} parent=1 // pred_check
      _
    $region31: #{tpu_custom_call.1} parent=1 // pred_check_branch
      %131 = sbr.rel (0) target = $region33
    $region32: #{tpu_custom_call.1} parent=1 // pred_region
      %133 = dma.done [#allocation4], 256
    $region33: #{tpu_custom_call.1} parent=1 // pred_fallthru
      _
    %134 = vsyncpa [#allocation3], 1
    %135 = vsyncpa [#allocation6], 1
    %136 = vsyncpa [#allocation4], 1

</llo_original>
